<compile_context>
chip_gen: v5e
topology: v5e:2x2
jax: 0.10.0
libtpu: 0.0.40
codegen_flags: <defaults>
</compile_context>

<pallas_src>
import jax
import jax.numpy as jnp
from jax.experimental import pallas as pl
from jax.experimental.pallas import tpu as pltpu


def _round_up(n, m):
    return ((n + m - 1) // m) * m


def _pick_hidden_tile(hidden_dim, desired):
    """Largest lane-aligned (multiple of 128) tile <= desired that divides hidden_dim."""
    if hidden_dim <= desired:
        return hidden_dim
    d = (desired // 128) * 128
    while d >= 128:
        if hidden_dim % d == 0:
            return d
        d -= 128
    return hidden_dim  # fall back: keep the hidden dim resident


def _swiglu_kernel(x_ref, wg_ref, bg_ref, wv_ref, bv_ref, wo_ref, bo_ref,
                   o_ref, acc_ref):
    # x_ref : (TM, dim)       bf16 token tile (resident across the hidden axis)
    # wg_ref: (dim, TH)       gate half of proj weight (bf16)
    # bg_ref: (1, TH)         gate bias (f32)
    # wv_ref: (dim, TH)       value half of proj weight (bf16)
    # bv_ref: (1, TH)         value bias (f32)
    # wo_ref: (TH, dim)       to_out weight slice (bf16)
    # bo_ref: (1, dim)        to_out bias (f32)
    # o_ref : (TM, dim)       output tile
    # acc_ref: (TM, dim) f32  accumulator over the hidden grid axis
    h = pl.program_id(1)

    @pl.when(h == 0)
    def _():
        acc_ref[...] = jnp.zeros_like(acc_ref)

    x = x_ref[...]
    gate = jnp.dot(x, wg_ref[...], preferred_element_type=jnp.float32) + bg_ref[...]
    value = jnp.dot(x, wv_ref[...], preferred_element_type=jnp.float32) + bv_ref[...]
    # SiLU(gate) * value, in f32 (sigmoid lowers to the EUP slot).
    act = gate * jax.nn.sigmoid(gate) * value
    acc_ref[...] += jnp.dot(act.astype(wo_ref.dtype), wo_ref[...],
                            preferred_element_type=jnp.float32)

    @pl.when(h == pl.num_programs(1) - 1)
    def _():
        o_ref[...] = (acc_ref[...] + bo_ref[...]).astype(o_ref.dtype)


def swiglu_pallas(x, w_proj, b_proj, w_out, b_out, *,
                  tile_m=256, tile_h=512, compute_dtype=jnp.bfloat16):
    """x: (..., dim) -> (..., dim), matching PyTorch SwiGLU.forward (dropout=0)."""
    orig_shape = x.shape
    dim = orig_shape[-1]
    hidden_dim = w_out.shape[0]
    assert w_proj.shape == (dim, 2 * hidden_dim)

    x2 = x.reshape(-1, dim)
    M = x2.shape[0]

    # --- M tiling: big tiles, pad the tail instead of asserting divisibility.
    tile_m = max(8, min(tile_m, _round_up(M, 8)))
    tile_m = _round_up(tile_m, 8)
    M_pad = _round_up(M, tile_m)
    if M_pad != M:
        x2 = jnp.pad(x2, ((0, M_pad - M), (0, 0)))

    # --- hidden tiling: lane-aligned tile that divides hidden_dim.
    tile_h = _pick_hidden_tile(hidden_dim, tile_h)

    # --- split proj into gate / value halves (no lane-dim slicing in-kernel).
    w_gate = w_proj[:, :hidden_dim].astype(compute_dtype)
    w_value = w_proj[:, hidden_dim:].astype(compute_dtype)
    b_gate = b_proj[:hidden_dim].reshape(1, hidden_dim).astype(jnp.float32)
    b_value = b_proj[hidden_dim:].reshape(1, hidden_dim).astype(jnp.float32)
    w_out_c = w_out.astype(compute_dtype)
    b_out2 = b_out.reshape(1, dim).astype(jnp.float32)
    xc = x2.astype(compute_dtype)

    grid = (M_pad // tile_m, hidden_dim // tile_h)

    # --- explicit VMEM budget sized from the actual blocks (double-buffered)
    #     plus the f32 accumulator scratch, capped at 64 MiB (v7x physical).
    itm = jnp.dtype(compute_dtype).itemsize
    out_itm = jnp.dtype(x.dtype).itemsize
    block_bytes = (
        tile_m * dim * itm            # x tile
        + 2 * dim * tile_h * itm      # w_gate + w_value tiles
        + tile_h * dim * itm          # w_out tile
        + 2 * tile_h * 4 + dim * 4    # biases (f32)
        + tile_m * dim * out_itm      # output tile
    )
    vmem_needed = 2 * block_bytes + tile_m * dim * 4
    vmem_limit = int(min(max(2 * vmem_needed, 32 * 2**20), 64 * 2**20))

    out2 = pl.pallas_call(
        _swiglu_kernel,
        out_shape=jax.ShapeDtypeStruct((M_pad, dim), x.dtype),
        grid_spec=pltpu.PrefetchScalarGridSpec(
            num_scalar_prefetch=0,
            grid=grid,
            in_specs=[
                pl.BlockSpec((tile_m, dim), lambda i, h: (i, 0)),    # x tile
                pl.BlockSpec((dim, tile_h), lambda i, h: (0, h)),    # w_gate
                pl.BlockSpec((1, tile_h), lambda i, h: (0, h)),      # b_gate
                pl.BlockSpec((dim, tile_h), lambda i, h: (0, h)),    # w_value
                pl.BlockSpec((1, tile_h), lambda i, h: (0, h)),      # b_value
                pl.BlockSpec((tile_h, dim), lambda i, h: (h, 0)),    # w_out
                pl.BlockSpec((1, dim), lambda i, h: (0, 0)),         # b_out
            ],
            out_specs=pl.BlockSpec((tile_m, dim), lambda i, h: (i, 0)),
            scratch_shapes=[pltpu.VMEM((tile_m, dim), jnp.float32)],
        ),
        compiler_params=pltpu.CompilerParams(
            dimension_semantics=("parallel", "arbitrary"),
            vmem_limit_bytes=vmem_limit,
        ),
    )(xc, w_gate, b_gate, w_value, b_value, w_out_c, b_out2)

    if M_pad != M:
        out2 = out2[:M]
    return out2.reshape(orig_shape)


def _reference(x, w_proj, b_proj, w_out, b_out, hidden_dim):
    h = x @ w_proj + b_proj
    gate, value = h[..., :hidden_dim], h[..., hidden_dim:]
    act = jax.nn.silu(gate) * value
    return act @ w_out + b_out


if __name__ == "__main__":
    # Small shapes consistent with the module: (batch, seq, dim), hidden = 4*dim.
    batch, seq, dim = 2, 8, 32
    hidden_dim = dim * 4  # 128

    key = jax.random.PRNGKey(0)
    kx, kwp, kbp, kwo, kbo = jax.random.split(key, 5)

    x = jax.random.normal(kx, (batch, seq, dim), dtype=jnp.float32)

    # Deterministic parameter init (PyTorch Linear-style uniform bounds), stored as (in, out).
    bp_bound = 1.0 / (dim ** 0.5)
    bo_bound = 1.0 / (hidden_dim ** 0.5)
    w_proj = jax.random.uniform(kwp, (dim, 2 * hidden_dim), jnp.float32, -bp_bound, bp_bound)
    b_proj = jax.random.uniform(kbp, (2 * hidden_dim,), jnp.float32, -bp_bound, bp_bound)
    w_out = jax.random.uniform(kwo, (hidden_dim, dim), jnp.float32, -bo_bound, bo_bound)
    b_out = jax.random.uniform(kbo, (dim,), jnp.float32, -bo_bound, bo_bound)

    out = swiglu_pallas(x, w_proj, b_proj, w_out, b_out)
    out = jax.block_until_ready(out)

    ref = _reference(x, w_proj, b_proj, w_out, b_out, hidden_dim)
    assert out.shape == (batch, seq, dim)
    # bf16 MXU inputs with f32 accumulation: tolerance loosened accordingly.
    assert jnp.allclose(out, ref, atol=2e-2, rtol=2e-2), "mismatch vs pure-JAX reference"

    # TODO(synk): attention / LayerNorm / embedding / final fc of SimpleTransformer are not
    # fused here; this kernel covers the SwiGLU feed-forward block (dropout=0 is identity).
    print("KERNEL_OK")
</pallas_src>

<mosaic_0001>
module attributes {stable_mosaic.version = 11 : i64} {
  func.func @_swiglu_kernel(%arg0: i32, %arg1: i32, %arg2: memref<16x32xbf16, #tpu.memory_space<vmem>>, %arg3: memref<32x128xbf16, #tpu.memory_space<vmem>>, %arg4: memref<1x128xf32, #tpu.memory_space<vmem>>, %arg5: memref<32x128xbf16, #tpu.memory_space<vmem>>, %arg6: memref<1x128xf32, #tpu.memory_space<vmem>>, %arg7: memref<128x32xbf16, #tpu.memory_space<vmem>>, %arg8: memref<1x32xf32, #tpu.memory_space<vmem>>, %arg9: memref<16x32xf32, #tpu.memory_space<vmem>>, %arg10: memref<16x32xf32, #tpu.memory_space<vmem>>) attributes {dimension_semantics = [#tpu.dimension_semantics<parallel>, #tpu.dimension_semantics<arbitrary>], iteration_bounds = array<i64: 1, 1>, scalar_prefetch = 0 : i64, scratch_operands = 1 : i64, tpu.core_type = #tpu.core_type<tc>, window_params = [{transform_indices = @transform_0, window_bounds = array<i64: 16, 32>}, {transform_indices = @transform_1, window_bounds = array<i64: 32, 128>}, {transform_indices = @transform_2, window_bounds = array<i64: 1, 128>}, {transform_indices = @transform_3, window_bounds = array<i64: 32, 128>}, {transform_indices = @transform_4, window_bounds = array<i64: 1, 128>}, {transform_indices = @transform_5, window_bounds = array<i64: 128, 32>}, {pipeline_mode = #tpu.pipeline_mode<synchronous>, transform_indices = @transform_6, window_bounds = array<i64: 1, 32>}, {transform_indices = @transform_7, window_bounds = array<i64: 16, 32>}]} {
    %c0_i32 = arith.constant 0 : i32
    %0 = arith.cmpi eq, %arg1, %c0_i32 : i32
    %1 = arith.extui %0 : i1 to i32
    %c0_i32_0 = arith.constant 0 : i32
    %2 = arith.cmpi ne, %1, %c0_i32_0 : i32
    scf.if %2 {
      %cst_21 = arith.constant 0.000000e+00 : f32
      %30 = vector.broadcast %cst_21 : f32 to vector<16x32xf32>
      %c0_22 = arith.constant 0 : index
      %c0_23 = arith.constant 0 : index
      %31 = vector.load %arg10[%c0_22, %c0_23] : memref<16x32xf32, #tpu.memory_space<vmem>>, vector<16x32xf32>
      tpu.vector_store %arg10[%c0_22, %c0_23], %30 {strides = array<i32>} : memref<16x32xf32, #tpu.memory_space<vmem>>, vector<16x32xf32>,
    } else {
    }
    %c0 = arith.constant 0 : index
    %c0_1 = arith.constant 0 : index
    %3 = vector.load %arg2[%c0, %c0_1] : memref<16x32xbf16, #tpu.memory_space<vmem>>, vector<16x32xbf16>
    %c0_2 = arith.constant 0 : index
    %c0_3 = arith.constant 0 : index
    %4 = vector.load %arg3[%c0_2, %c0_3] : memref<32x128xbf16, #tpu.memory_space<vmem>>, vector<32x128xbf16>
    %cst = arith.constant dense<0.000000e+00> : vector<16x128xf32>
    %5 = tpu.matmul %3, %4, %cst {dimension_numbers = #tpu.dot_dimension_numbers<[1], [0], [0], [1], [0, 0, 1, 1], [], []>} : vector<16x32xbf16>, vector<32x128xbf16>, vector<16x128xf32> -> vector<16x128xf32>
    %c0_4 = arith.constant 0 : index
    %c0_5 = arith.constant 0 : index
    %6 = vector.load %arg4[%c0_4, %c0_5] : memref<1x128xf32, #tpu.memory_space<vmem>>, vector<1x128xf32>
    %7 = vector.broadcast %6 : vector<1x128xf32> to vector<16x128xf32>
    %8 = arith.addf %5, %7 : vector<16x128xf32>
    %c0_6 = arith.constant 0 : index
    %c0_7 = arith.constant 0 : index
    %9 = vector.load %arg5[%c0_6, %c0_7] : memref<32x128xbf16, #tpu.memory_space<vmem>>, vector<32x128xbf16>
    %cst_8 = arith.constant dense<0.000000e+00> : vector<16x128xf32>
    %10 = tpu.matmul %3, %9, %cst_8 {dimension_numbers = #tpu.dot_dimension_numbers<[1], [0], [0], [1], [0, 0, 1, 1], [], []>} : vector<16x32xbf16>, vector<32x128xbf16>, vector<16x128xf32> -> vector<16x128xf32>
    %c0_9 = arith.constant 0 : index
    %c0_10 = arith.constant 0 : index
    %11 = vector.load %arg6[%c0_9, %c0_10] : memref<1x128xf32, #tpu.memory_space<vmem>>, vector<1x128xf32>
    %12 = vector.broadcast %11 : vector<1x128xf32> to vector<16x128xf32>
    %13 = arith.addf %10, %12 : vector<16x128xf32>
    %14 = arith.negf %8 : vector<16x128xf32>
    %15 = math.exp %14 : vector<16x128xf32>
    %cst_11 = arith.constant 1.000000e+00 : f32
    %16 = vector.broadcast %cst_11 : f32 to vector<16x128xf32>
    %17 = arith.addf %16, %15 : vector<16x128xf32>
    %18 = arith.divf %16, %17 : vector<16x128xf32>
    %19 = arith.mulf %8, %18 : vector<16x128xf32>
    %20 = arith.mulf %19, %13 : vector<16x128xf32>
    %c0_12 = arith.constant 0 : index
    %c0_13 = arith.constant 0 : index
    %21 = vector.load %arg10[%c0_12, %c0_13] : memref<16x32xf32, #tpu.memory_space<vmem>>, vector<16x32xf32>
    %22 = arith.truncf %20 : vector<16x128xf32> to vector<16x128xbf16>
    %c0_14 = arith.constant 0 : index
    %c0_15 = arith.constant 0 : index
    %23 = vector.load %arg7[%c0_14, %c0_15] : memref<128x32xbf16, #tpu.memory_space<vmem>>, vector<128x32xbf16>
    %cst_16 = arith.constant dense<0.000000e+00> : vector<16x32xf32>
    %24 = tpu.matmul %22, %23, %cst_16 {dimension_numbers = #tpu.dot_dimension_numbers<[1], [0], [0], [1], [0, 0, 1, 1], [], []>} : vector<16x128xbf16>, vector<128x32xbf16>, vector<16x32xf32> -> vector<16x32xf32>
    %25 = arith.addf %21, %24 : vector<16x32xf32>
    %c0_17 = arith.constant 0 : index
    %c0_18 = arith.constant 0 : index
    %26 = vector.load %arg10[%c0_17, %c0_18] : memref<16x32xf32, #tpu.memory_space<vmem>>, vector<16x32xf32>
    tpu.vector_store %arg10[%c0_17, %c0_18], %25 {strides = array<i32>} : memref<16x32xf32, #tpu.memory_space<vmem>>, vector<16x32xf32>,
    %c0_i32_19 = arith.constant 0 : i32
    %27 = arith.cmpi eq, %arg1, %c0_i32_19 : i32
    %28 = arith.extui %27 : i1 to i32
    %c0_i32_20 = arith.constant 0 : i32
    %29 = arith.cmpi ne, %28, %c0_i32_20 : i32
    scf.if %29 {
      %c0_21 = arith.constant 0 : index
      %c0_22 = arith.constant 0 : index
      %30 = vector.load %arg10[%c0_21, %c0_22] : memref<16x32xf32, #tpu.memory_space<vmem>>, vector<16x32xf32>
      %c0_23 = arith.constant 0 : index
      %c0_24 = arith.constant 0 : index
      %31 = vector.load %arg8[%c0_23, %c0_24] : memref<1x32xf32, #tpu.memory_space<vmem>>, vector<1x32xf32>
      %32 = vector.broadcast %31 : vector<1x32xf32> to vector<16x32xf32>
      %33 = arith.addf %30, %32 : vector<16x32xf32>
      %c0_25 = arith.constant 0 : index
      %c0_26 = arith.constant 0 : index
      %34 = vector.load %arg9[%c0_25, %c0_26] : memref<16x32xf32, #tpu.memory_space<vmem>>, vector<16x32xf32>
      tpu.vector_store %arg9[%c0_25, %c0_26], %33 {strides = array<i32>} : memref<16x32xf32, #tpu.memory_space<vmem>>, vector<16x32xf32>,
    } else {
    }
    return
  }
  func.func @transform_0(%arg0: i32, %arg1: i32) -> (i32, i32) {
    %c0_i32 = arith.constant 0 : i32
    %c0_i32_0 = arith.constant 0 : i32
    return %arg0, %c0_i32 : i32, i32
  }
  func.func @transform_1(%arg0: i32, %arg1: i32) -> (i32, i32) {
    %c0_i32 = arith.constant 0 : i32
    %c0_i32_0 = arith.constant 0 : i32
    return %c0_i32, %arg1 : i32, i32
  }
  func.func @transform_2(%arg0: i32, %arg1: i32) -> (i32, i32) {
    %c0_i32 = arith.constant 0 : i32
    %c0_i32_0 = arith.constant 0 : i32
    return %c0_i32, %arg1 : i32, i32
  }
  func.func @transform_3(%arg0: i32, %arg1: i32) -> (i32, i32) {
    %c0_i32 = arith.constant 0 : i32
    %c0_i32_0 = arith.constant 0 : i32
    return %c0_i32, %arg1 : i32, i32
  }
  func.func @transform_4(%arg0: i32, %arg1: i32) -> (i32, i32) {
    %c0_i32 = arith.constant 0 : i32
    %c0_i32_0 = arith.constant 0 : i32
    return %c0_i32, %arg1 : i32, i32
  }
  func.func @transform_5(%arg0: i32, %arg1: i32) -> (i32, i32) {
    %c0_i32 = arith.constant 0 : i32
    %c0_i32_0 = arith.constant 0 : i32
    return %arg1, %c0_i32 : i32, i32
  }
  func.func @transform_6(%arg0: i32, %arg1: i32) -> (i32, i32) {
    %c0_i32 = arith.constant 0 : i32
    %c0_i32_0 = arith.constant 0 : i32
    %c0_i32_1 = arith.constant 0 : i32
    return %c0_i32, %c0_i32_0 : i32, i32
  }
  func.func @transform_7(%arg0: i32, %arg1: i32) -> (i32, i32) {
    %c0_i32 = arith.constant 0 : i32
    %c0_i32_0 = arith.constant 0 : i32
    return %arg0, %c0_i32 : i32, i32
  }
}

</mosaic_0001>

<llo_original>
// kernel: tpu_custom_call.1
$region0: #{tpu_custom_call.1}
  #allocation0 [shape = 'u32[]', space=smem, size = 0x4, offset = 0x4, fixed_abs, tag = 'smem constant byte address 0x4 - core index']
  #allocation1 [shape = 'u32[72,128]{1,0:T(1,128)}', space=vmem, size = 0x9000, scoped, tag = 'internal scratch']
  #allocation2 [shape = 'f32[16,32]{1,0:T(8,128)}', space=vmem, size = 0x2000, scoped, tag = 'scratch operand']
  %s0 = inlined_call_operand.vmem [shape: bf16[16,32], index: 0, kind: input, shape index: {}]
  %s1 = inlined_call_operand.vmem [shape: bf16[32,128], index: 1, kind: input, shape index: {}]
  %s2 = inlined_call_operand.vmem [shape: f32[1,128], index: 2, kind: input, shape index: {}]
  %s3 = inlined_call_operand.vmem [shape: bf16[32,128], index: 3, kind: input, shape index: {}]
  %s4 = inlined_call_operand.vmem [shape: f32[1,128], index: 4, kind: input, shape index: {}]
  %s5 = inlined_call_operand.vmem [shape: bf16[128,32], index: 5, kind: input, shape index: {}]
  %s6 = inlined_call_operand.vmem [shape: f32[1,32], index: 6, kind: input, shape index: {}]
  %s7 = inlined_call_operand.hbm [shape: f32[16,32], index: 7, kind: output, shape index: {}]
  %s8 = sld [smem:[#allocation0]]
  $region46: #{tpu_custom_call.1} parent=0
    _
  %s10 = ssub.s32 1, %s8
  %s11 = scalar_select 0, %s10, %s8
  $region1: #{tpu_custom_call.1} parent=0
    #allocation3 [shape = 'u8[8192]{0}', space=vmem, size = 0x2000, scoped, tag = 'output window, operand 0, single buffered']
    #allocation4 [shape = 's32[1]{0}', space=sflag, size = 0x4, scoped, tag = 'scoped memory for tpu_custom_call.1']
    %12 = vsyncpa [#allocation4], 0
    // Predicated region
    $region2: #{tpu_custom_call.1} parent=1 // pred_check
      _
    $region3: #{tpu_custom_call.1} parent=1 // pred_check_branch
      %14 = sbr.rel (0) target = $region5
    $region4: #{tpu_custom_call.1} parent=1 // pred_region
      _
    $region5: #{tpu_custom_call.1} parent=1 // pred_fallthru
      _
    // Predicated region
    $region6: #{tpu_custom_call.1} parent=1 // pred_check
      _
    $region7: #{tpu_custom_call.1} parent=1 // pred_check_branch
      %16 = sbr.rel (0) target = $region9
    $region8: #{tpu_custom_call.1} parent=1 // pred_region
      _
    $region9: #{tpu_custom_call.1} parent=1 // pred_fallthru
      _
    // Predicated region
    $region10: #{tpu_custom_call.1} parent=1 // pred_check
      _
    $region11: #{tpu_custom_call.1} parent=1 // pred_check_branch
      %18 = sbr.rel (0) target = $region13
    $region12: #{tpu_custom_call.1} parent=1 // pred_region
      _
    $region13: #{tpu_custom_call.1} parent=1 // pred_fallthru
      _
    // Predicated region
    $region14: #{tpu_custom_call.1} parent=1 // pred_check
      _
    $region15: #{tpu_custom_call.1} parent=1 // pred_check_branch
      %20 = sbr.rel (0) target = $region17
    $region16: #{tpu_custom_call.1} parent=1 // pred_region
      _
    $region17: #{tpu_custom_call.1} parent=1 // pred_fallthru
      _
    // Predicated region
    $region18: #{tpu_custom_call.1} parent=1 // pred_check
      _
    $region19: #{tpu_custom_call.1} parent=1 // pred_check_branch
      %22 = sbr.rel (0) target = $region21
    $region20: #{tpu_custom_call.1} parent=1 // pred_region
      _
    $region21: #{tpu_custom_call.1} parent=1 // pred_fallthru
      _
    // Predicated region
    $region22: #{tpu_custom_call.1} parent=1 // pred_check
      _
    $region23: #{tpu_custom_call.1} parent=1 // pred_check_branch
      %24 = sbr.rel (0) target = $region25
    $region24: #{tpu_custom_call.1} parent=1 // pred_region
      _
    $region25: #{tpu_custom_call.1} parent=1 // pred_fallthru
      _
    // Predicated region
    $region26: #{tpu_custom_call.1} parent=1 // pred_check
      _
    $region27: #{tpu_custom_call.1} parent=1 // pred_check_branch
      %26 = sbr.rel (0) target = $region29
    $region28: #{tpu_custom_call.1} parent=1 // pred_region
      _
    $region29: #{tpu_custom_call.1} parent=1 // pred_fallthru
      _
    %p28 = scmp.eq.s32.totalorder 0, 0
    // Predicated region
    $region30: #{tpu_custom_call.1} parent=1 // pred_check
      %p29 = pneg %p28
    $region31: #{tpu_custom_call.1} parent=1 // pred_check_branch
      %31 = sbr.rel (%p29) target = $region33
    $region32: #{tpu_custom_call.1} parent=1 // pred_region
      %vm32 = vcmask 261120
      %33 = vst.msk [vmem:[#allocation2] sm:$0xff] %vm32, 0.0
      %34 = vst.msk [vmem:[#allocation2 + $0x8] sm:$0xff] %vm32, 0.0
    $region33: #{tpu_custom_call.1} parent=1 // pred_fallthru
      _
    %v35 = vld [vmem:[%s0] sm:$0xf]
    %v36 = vld [vmem:[%s0 + $0x4] sm:$0xf]
    %v37 = vld [vmem:[%s1] sm:$0xf]
    %v38 = vld [vmem:[%s1 + $0x4] sm:$0xf]
    %v39 = vld [vmem:[%s1 + $0x8] sm:$0xf]
    %v40 = vld [vmem:[%s1 + $0xc] sm:$0xf]
    %v41 = vld [vmem:[%s2] sm:$0x1]
    %v43 = vperm.slane %v41, 0
    %v47 = vunpack.c.l.b16 %v35
    %v48 = vunpack.c.l.b16 %v36
    %v49 = vpack.c.b16 %v48, %v47
    %v54 = vunpack.c.l.b16 %v37
    %v55 = vunpack.c.l.b16 %v38
    %v56 = vunpack.c.l.b16 %v39
    %v57 = vunpack.c.l.b16 %v40
    %v58 = vpack.c.b16 %v55, %v54
    %v59 = vpack.c.b16 %v57, %v56
    %vm62 = vcmask 261120
    %v64 = vsel %vm62, %v49, 0
    %66 = vmatpush.bf16.msra.mxu0 0
    %67 = vmatpush.bf16.msra.mxu0 0
    %68 = vmatpush.bf16.msra.mxu0 0
    %69 = vmatpush.bf16.msra.mxu0 0
    %70 = vmatpush.bf16.msra.mxu0 0
    %71 = vmatpush.bf16.msra.mxu0 0
    %72 = vmatpush.bf16.msra.mxu0 %v59
    %73 = vmatpush.bf16.msra.mxu0 %v58
    %74 = vmatmul.bf16.gmra.mxu0 %v64
    %v75 = vpop.f32.mrf.mxu0
    %v76 = vadd.f32 %v43, %v75
    %v77 = vpop.f32.mrf.mxu0
    %v78 = vadd.f32 %v43, %v77
    %79 = vdwg.mxu0
    %v80 = vld [vmem:[%s3] sm:$0xf]
    %v81 = vld [vmem:[%s3 + $0x4] sm:$0xf]
    %v82 = vld [vmem:[%s3 + $0x8] sm:$0xf]
    %v83 = vld [vmem:[%s3 + $0xc] sm:$0xf]
    %v84 = vld [vmem:[%s4] sm:$0x1]
    %v86 = vperm.slane %v84, 0
    %v92 = vunpack.c.l.b16 %v80
    %v93 = vunpack.c.l.b16 %v81
    %v94 = vunpack.c.l.b16 %v82
    %v95 = vunpack.c.l.b16 %v83
    %v96 = vpack.c.b16 %v93, %v92
    %v97 = vpack.c.b16 %v95, %v94
    %100 = vmatpush.bf16.msra.mxu0 0
    %101 = vmatpush.bf16.msra.mxu0 0
    %102 = vmatpush.bf16.msra.mxu0 0
    %103 = vmatpush.bf16.msra.mxu0 0
    %104 = vmatpush.bf16.msra.mxu0 0
    %105 = vmatpush.bf16.msra.mxu0 0
    %106 = vmatpush.bf16.msra.mxu0 %v97
    %107 = vmatpush.bf16.msra.mxu0 %v96
    %108 = vmatmul.bf16.gmra.mxu0 %v64
    %v109 = vpop.f32.mrf.mxu0
    %v110 = vadd.f32 %v86, %v109
    %v111 = vpop.f32.mrf.mxu0
    %v112 = vadd.f32 %v86, %v111
    %113 = vdwg.mxu0
    %v114 = vxor.u32 %v76, 2147483648
    %v115 = vxor.u32 %v78, 2147483648
    %v116 = vmul.f32 %v114, 1.442695
    %v117 = vpow.pop %v116
    %v118 = vmul.f32 %v115, 1.442695
    %v119 = vpow.pop %v118
    %v120 = vadd.f32 %v117, 1.0
    %v121 = vadd.f32 %v119, 1.0
    %v122 = vrcp.pop %v120
    %v123 = vmul.f32 %v120, %v122
    %v124 = vsub.f32 1.0, %v123
    %v125 = vmul.f32 %v122, %v124
    %v126 = vadd.f32 %v122, %v125
    %vm127 = vweird.f32 %v120
    %vm128 = vweird.f32 %v122
    %vm129 = vmor %vm127, %vm128
    %v130 = vsel %vm129, %v122, %v126
    %v131 = vand.u32 2147483647, %v120
    %vm132 = vcmp.eq.f32.partialorder %v131, 8.507059e+37
    %v133 = vand.u32 %v120, 2147483648
    %v134 = vor.u32 1.1754944e-38, %v133
    %v135 = vsel %vm132, %v134, %v130
    %v136 = vmul.f32 1.0, %v135
    %v137 = vrcp.pop %v121
    %v138 = vmul.f32 %v121, %v137
    %v139 = vsub.f32 1.0, %v138
    %v140 = vmul.f32 %v137, %v139
    %v141 = vadd.f32 %v137, %v140
    %vm142 = vweird.f32 %v121
    %vm143 = vweird.f32 %v137
    %vm144 = vmor %vm142, %vm143
    %v145 = vsel %vm144, %v137, %v141
    %v146 = vand.u32 2147483647, %v121
    %vm147 = vcmp.eq.f32.partialorder %v146, 8.507059e+37
    %v148 = vand.u32 %v121, 2147483648
    %v149 = vor.u32 1.1754944e-38, %v148
    %v150 = vsel %vm147, %v149, %v145
    %v151 = vmul.f32 1.0, %v150
    %v152 = vmul.f32 %v76, %v136
    %v153 = vmul.f32 %v78, %v151
    %v154 = vmul.f32 %v152, %v110
    %v155 = vmul.f32 %v153, %v112
    %v156 = vld [vmem:[#allocation2] sm:$0xff]
    %v157 = vld [vmem:[#allocation2 + $0x8] sm:$0xff]
    %v158 = vpack.c.bf16 %v155, %v154
    %v159 = vld [vmem:[%s5] sm:$0xf]
    %v160 = vld [vmem:[%s5 + $0x4] sm:$0xf]
    %v161 = vld [vmem:[%s5 + $0x8] sm:$0xf]
    %v162 = vld [vmem:[%s5 + $0xc] sm:$0xf]
    %v163 = vld [vmem:[%s5 + $0x10] sm:$0xf]
    %v164 = vld [vmem:[%s5 + $0x14] sm:$0xf]
    %v165 = vld [vmem:[%s5 + $0x18] sm:$0xf]
    %v166 = vld [vmem:[%s5 + $0x1c] sm:$0xf]
    %v167 = vld [vmem:[%s5 + $0x20] sm:$0xf]
    %v168 = vld [vmem:[%s5 + $0x24] sm:$0xf]
    %v169 = vld [vmem:[%s5 + $0x28] sm:$0xf]
    %v170 = vld [vmem:[%s5 + $0x2c] sm:$0xf]
    %v171 = vld [vmem:[%s5 + $0x30] sm:$0xf]
    %v172 = vld [vmem:[%s5 + $0x34] sm:$0xf]
    %v173 = vld [vmem:[%s5 + $0x38] sm:$0xf]
    %v174 = vld [vmem:[%s5 + $0x3c] sm:$0xf]
    %v191 = vunpack.c.l.b16 %v159
    %v192 = vunpack.c.l.b16 %v160
    %v193 = vunpack.c.l.b16 %v161
    %v194 = vunpack.c.l.b16 %v162
    %v195 = vunpack.c.l.b16 %v163
    %v196 = vunpack.c.l.b16 %v164
    %v197 = vunpack.c.l.b16 %v165
    %v198 = vunpack.c.l.b16 %v166
    %v199 = vunpack.c.l.b16 %v167
    %v200 = vunpack.c.l.b16 %v168
    %v201 = vunpack.c.l.b16 %v169
    %v202 = vunpack.c.l.b16 %v170
    %v203 = vunpack.c.l.b16 %v171
    %v204 = vunpack.c.l.b16 %v172
    %v205 = vunpack.c.l.b16 %v173
    %v206 = vunpack.c.l.b16 %v174
    %v207 = vpack.c.b16 %v192, %v191
    %v208 = vpack.c.b16 %v194, %v193
    %v209 = vpack.c.b16 %v196, %v195
    %v210 = vpack.c.b16 %v198, %v197
    %v211 = vpack.c.b16 %v200, %v199
    %v212 = vpack.c.b16 %v202, %v201
    %v213 = vpack.c.b16 %v204, %v203
    %v214 = vpack.c.b16 %v206, %v205
    %223 = vmatpush.bf16.msra.mxu0 %v214
    %224 = vmatpush.bf16.msra.mxu0 %v213
    %225 = vmatpush.bf16.msra.mxu0 %v212
    %226 = vmatpush.bf16.msra.mxu0 %v211
    %227 = vmatpush.bf16.msra.mxu0 %v210
    %228 = vmatpush.bf16.msra.mxu0 %v209
    %229 = vmatpush.bf16.msra.mxu0 %v208
    %230 = vmatpush.bf16.msra.mxu0 %v207
    %231 = vmatmul.bf16.gmra.mxu0 %v158
    %v232 = vpop.f32.mrf.mxu0
    %v233 = vadd.f32 0.0, %v232
    %v234 = vpop.f32.mrf.mxu0
    %v235 = vadd.f32 0.0, %v234
    %236 = vdwg.mxu0
    %v237 = vadd.f32 %v156, %v233
    %v238 = vadd.f32 %v157, %v235
    %239 = vst.msk [vmem:[#allocation2] sm:$0xff] %vm62, %v237
    %240 = vst.msk [vmem:[#allocation2 + $0x8] sm:$0xff] %vm62, %v238
    // Predicated region
    $region34: #{tpu_custom_call.1} parent=1 // pred_check
      %p241 = pneg %p28
    $region35: #{tpu_custom_call.1} parent=1 // pred_check_branch
      %243 = sbr.rel (%p241) target = $region37
    $region36: #{tpu_custom_call.1} parent=1 // pred_region
      %v244 = vld [vmem:[#allocation2] sm:$0xff]
      %v245 = vld [vmem:[#allocation2 + $0x8] sm:$0xff]
      %v246 = vld [vmem:[%s6] sm:$0x1]
      %v248 = vperm.slane %v246, 0
      %v250 = vadd.f32 %v244, %v248
      %v251 = vadd.f32 %v245, %v248
      %252 = vst.msk [vmem:[#allocation3] sm:$0xff] %vm62, %v250
      %253 = vst.msk [vmem:[#allocation3 + $0x8] sm:$0xff] %vm62, %v251
    $region37: #{tpu_custom_call.1} parent=1 // pred_fallthru
      _
    // Predicated region
    $region38: #{tpu_custom_call.1} parent=1 // pred_check
      _
    $region39: #{tpu_custom_call.1} parent=1 // pred_check_branch
      %255 = sbr.rel (0) target = $region41
    $region40: #{tpu_custom_call.1} parent=1 // pred_region
      %257 = vsyncadd [#allocation4], 0
      %s258 = sshll.u32 [#allocation3], 4
      %s259 = int_to_ptr.vmem [resolvable:$true] %s258
      %s260 = sshll.u32 %s7, 4
      %s261 = int_to_ptr.hbm [resolvable:$true] %s260
      %266 = dma.vmem_to_hbm [thread:$0]  %s259, 256, %s261, [#allocation4], 128, 128, 8
    $region41: #{tpu_custom_call.1} parent=1 // pred_fallthru
      _
    // Predicated region
    $region42: #{tpu_custom_call.1} parent=1 // pred_check
      _
    $region43: #{tpu_custom_call.1} parent=1 // pred_check_branch
      %268 = sbr.rel (0) target = $region45
    $region44: #{tpu_custom_call.1} parent=1 // pred_region
      %270 = dma.done [#allocation4], 256
    $region45: #{tpu_custom_call.1} parent=1 // pred_fallthru
      _
    %271 = vsyncpa [#allocation4], 1

</llo_original>
